<compile_context>
chip_gen: v6e
topology: v6e:2x2x1
jax: 0.10.0
libtpu: 0.0.40
codegen_flags: <defaults>
</compile_context>

<pallas_src>
import jax
import jax.numpy as jnp
from jax.experimental import pallas as pl
from jax.experimental.pallas import tpu as pltpu


def _conv1x1_kernel(w_ref, x_ref, o_ref):
    # w_ref: (C_out, C_in) resident weight tile
    # x_ref: (1, C_in, T_hw) input tile  (pixels on lanes)
    # o_ref: (1, C_out, T_hw) output tile (pixels on lanes)
    c_out, c_in = w_ref.shape
    if c_in <= 16:
        # Unrolled VPU broadcast-MAC over input channels; accumulate in f32
        # registers, single lane-dense store at the end.
        acc = (w_ref[:, 0:1].astype(jnp.float32)
               * x_ref[0, 0:1, :].astype(jnp.float32))
        for ci in range(1, c_in):
            acc = acc + (w_ref[:, ci:ci + 1].astype(jnp.float32)
                         * x_ref[0, ci:ci + 1, :].astype(jnp.float32))
        o_ref[0] = acc.astype(o_ref.dtype)
    else:
        # Larger channel counts: let the MXU do it.
        o_ref[0] = jnp.dot(
            w_ref[...], x_ref[0], preferred_element_type=jnp.float32
        ).astype(o_ref.dtype)


def projector_block(x_nchw, weight_oihw, *, max_tile_hw=8192):
    """1x1 conv, no bias. x_nchw: (N, C_in, H, W), weight_oihw: (C_out, C_in, 1, 1)."""
    N, C_in, H, W = x_nchw.shape
    C_out = weight_oihw.shape[0]
    HW = H * W

    # Free reshapes only — no transposes, data stays in NCHW order.
    x3 = x_nchw.reshape(N, C_in, HW)
    w_mat = weight_oihw.reshape(C_out, C_in)

    # Pick a lane-dense pixel tile: multiple of 128, as large as a modest VMEM
    # budget allows (sized against v7x's smaller VMEM; double-buffered in+out).
    dtype_bytes = jnp.dtype(x_nchw.dtype).itemsize
    vmem_budget = 8 * 1024 * 1024
    per_lane_bytes = (C_in + C_out) * dtype_bytes * 2  # 2 = double buffering
    t_cap = max(128, (vmem_budget // per_lane_bytes) // 128 * 128)

    hw_pad = ((HW + 127) // 128) * 128
    t_hw = min(max_tile_hw, hw_pad, t_cap)
    hw_pad = ((hw_pad + t_hw - 1) // t_hw) * t_hw  # make tile divide padded HW

    if hw_pad != HW:
        x3 = jnp.pad(x3, ((0, 0), (0, 0), (0, hw_pad - HW)))

    grid = (N, hw_pad // t_hw)

    out_padded = pl.pallas_call(
        _conv1x1_kernel,
        out_shape=jax.ShapeDtypeStruct((N, C_out, hw_pad), x_nchw.dtype),
        grid_spec=pltpu.PrefetchScalarGridSpec(
            num_scalar_prefetch=0,
            grid=grid,
            in_specs=[
                # Weight: full block, constant index -> stays resident in VMEM.
                pl.BlockSpec((C_out, C_in), lambda n, t: (0, 0)),
                # Input: one batch element, all channels, one pixel tile.
                pl.BlockSpec((1, C_in, t_hw), lambda n, t: (n, 0, t)),
            ],
            out_specs=pl.BlockSpec((1, C_out, t_hw), lambda n, t: (n, 0, t)),
        ),
        compiler_params=pltpu.CompilerParams(
            dimension_semantics=("parallel", "parallel"),
        ),
    )(w_mat, x3)

    out = out_padded[:, :, :HW] if hw_pad != HW else out_padded
    return out.reshape(N, C_out, H, W)


if __name__ == "__main__":
    key = jax.random.PRNGKey(0)
    kx, kw = jax.random.split(key)

    # Small shapes consistent with the module: batch=2, in_features=4,
    # out_features=8, spatial=16x16.
    Nb, C_in, C_out, Hs, Ws = 2, 4, 8, 16, 16

    x = jax.random.normal(kx, (Nb, C_in, Hs, Ws), dtype=jnp.float32)

    # Weight init matching nn.Conv2d(C_in, C_out, 1, bias=False):
    # uniform in [-1/sqrt(fan_in), 1/sqrt(fan_in)], fan_in = C_in * 1 * 1.
    bound = 1.0 / jnp.sqrt(jnp.float32(C_in))
    weight = jax.random.uniform(
        kw, (C_out, C_in, 1, 1), dtype=jnp.float32, minval=-bound, maxval=bound
    )

    out = projector_block(x, weight)
    out = jax.block_until_ready(out)

    # Pure-JAX reference: 1x1 conv == einsum over channels.
    ref = jnp.einsum("nchw,oc->nohw", x, weight[:, :, 0, 0])
    assert out.shape == (Nb, C_out, Hs, Ws)
    assert jnp.allclose(out, ref, atol=1e-5, rtol=1e-5)

    print("KERNEL_OK")
</pallas_src>

<mosaic_0001>
module attributes {stable_mosaic.version = 11 : i64} {
  func.func @_conv1x1_kernel(%arg0: i32, %arg1: i32, %arg2: memref<8x4xf32, #tpu.memory_space<vmem>>, %arg3: memref<1x4x256xf32, #tpu.memory_space<vmem>>, %arg4: memref<1x8x256xf32, #tpu.memory_space<vmem>>) attributes {dimension_semantics = [#tpu.dimension_semantics<parallel>, #tpu.dimension_semantics<parallel>], iteration_bounds = array<i64: 2, 1>, scalar_prefetch = 0 : i64, scratch_operands = 0 : i64, tpu.core_type = #tpu.core_type<tc>, window_params = [{pipeline_mode = #tpu.pipeline_mode<synchronous>, transform_indices = @transform_0, window_bounds = array<i64: 8, 4>}, {transform_indices = @transform_1, window_bounds = array<i64: 1, 4, 256>}, {transform_indices = @transform_2, window_bounds = array<i64: 1, 8, 256>}]} {
    %c0 = arith.constant 0 : index
    %c0_0 = arith.constant 0 : index
    %0 = vector.load %arg2[%c0, %c0_0] : memref<8x4xf32, #tpu.memory_space<vmem>>, vector<8x1xf32>
    %c0_1 = arith.constant 0 : index
    %c0_2 = arith.constant 0 : index
    %c0_3 = arith.constant 0 : index
    %1 = vector.load %arg3[%c0_1, %c0_2, %c0_3] : memref<1x4x256xf32, #tpu.memory_space<vmem>>, vector<1x1x256xf32>
    %2 = vector.shape_cast %1 : vector<1x1x256xf32> to vector<1x256xf32>
    %3 = vector.broadcast %0 : vector<8x1xf32> to vector<8x256xf32>
    %4 = vector.broadcast %2 : vector<1x256xf32> to vector<8x256xf32>
    %5 = arith.mulf %3, %4 : vector<8x256xf32>
    %c0_4 = arith.constant 0 : index
    %c1 = arith.constant 1 : index
    %6 = vector.load %arg2[%c0_4, %c1] : memref<8x4xf32, #tpu.memory_space<vmem>>, vector<8x1xf32>
    %c0_5 = arith.constant 0 : index
    %c1_6 = arith.constant 1 : index
    %c0_7 = arith.constant 0 : index
    %7 = vector.load %arg3[%c0_5, %c1_6, %c0_7] : memref<1x4x256xf32, #tpu.memory_space<vmem>>, vector<1x1x256xf32>
    %8 = vector.shape_cast %7 : vector<1x1x256xf32> to vector<1x256xf32>
    %9 = vector.broadcast %6 : vector<8x1xf32> to vector<8x256xf32>
    %10 = vector.broadcast %8 : vector<1x256xf32> to vector<8x256xf32>
    %11 = arith.mulf %9, %10 : vector<8x256xf32>
    %12 = arith.addf %5, %11 : vector<8x256xf32>
    %c0_8 = arith.constant 0 : index
    %c2 = arith.constant 2 : index
    %13 = vector.load %arg2[%c0_8, %c2] : memref<8x4xf32, #tpu.memory_space<vmem>>, vector<8x1xf32>
    %c0_9 = arith.constant 0 : index
    %c2_10 = arith.constant 2 : index
    %c0_11 = arith.constant 0 : index
    %14 = vector.load %arg3[%c0_9, %c2_10, %c0_11] : memref<1x4x256xf32, #tpu.memory_space<vmem>>, vector<1x1x256xf32>
    %15 = vector.shape_cast %14 : vector<1x1x256xf32> to vector<1x256xf32>
    %16 = vector.broadcast %13 : vector<8x1xf32> to vector<8x256xf32>
    %17 = vector.broadcast %15 : vector<1x256xf32> to vector<8x256xf32>
    %18 = arith.mulf %16, %17 : vector<8x256xf32>
    %19 = arith.addf %12, %18 : vector<8x256xf32>
    %c0_12 = arith.constant 0 : index
    %c3 = arith.constant 3 : index
    %20 = vector.load %arg2[%c0_12, %c3] : memref<8x4xf32, #tpu.memory_space<vmem>>, vector<8x1xf32>
    %c0_13 = arith.constant 0 : index
    %c3_14 = arith.constant 3 : index
    %c0_15 = arith.constant 0 : index
    %21 = vector.load %arg3[%c0_13, %c3_14, %c0_15] : memref<1x4x256xf32, #tpu.memory_space<vmem>>, vector<1x1x256xf32>
    %22 = vector.shape_cast %21 : vector<1x1x256xf32> to vector<1x256xf32>
    %23 = vector.broadcast %20 : vector<8x1xf32> to vector<8x256xf32>
    %24 = vector.broadcast %22 : vector<1x256xf32> to vector<8x256xf32>
    %25 = arith.mulf %23, %24 : vector<8x256xf32>
    %26 = arith.addf %19, %25 : vector<8x256xf32>
    %c0_16 = arith.constant 0 : index
    %c0_17 = arith.constant 0 : index
    %c0_18 = arith.constant 0 : index
    %27 = vector.load %arg4[%c0_16, %c0_17, %c0_18] : memref<1x8x256xf32, #tpu.memory_space<vmem>>, vector<1x8x256xf32>
    %28 = vector.shape_cast %27 : vector<1x8x256xf32> to vector<8x256xf32>
    %29 = vector.shape_cast %26 : vector<8x256xf32> to vector<1x8x256xf32>
    tpu.vector_store %arg4[%c0_16, %c0_17, %c0_18], %29 {strides = array<i32>} : memref<1x8x256xf32, #tpu.memory_space<vmem>>, vector<1x8x256xf32>,
    return
  }
  func.func @transform_0(%arg0: i32, %arg1: i32) -> (i32, i32) {
    %c0_i32 = arith.constant 0 : i32
    %c0_i32_0 = arith.constant 0 : i32
    %c0_i32_1 = arith.constant 0 : i32
    return %c0_i32, %c0_i32_0 : i32, i32
  }
  func.func @transform_1(%arg0: i32, %arg1: i32) -> (i32, i32, i32) {
    %c0_i32 = arith.constant 0 : i32
    %c0_i32_0 = arith.constant 0 : i32
    return %arg0, %c0_i32, %arg1 : i32, i32, i32
  }
  func.func @transform_2(%arg0: i32, %arg1: i32) -> (i32, i32, i32) {
    %c0_i32 = arith.constant 0 : i32
    %c0_i32_0 = arith.constant 0 : i32
    return %arg0, %c0_i32, %arg1 : i32, i32, i32
  }
}

</mosaic_0001>

<llo_original>
// kernel: tpu_custom_call.1
$region0: #{tpu_custom_call.1}
  #allocation0 [shape = 'u32[]', space=smem, size = 0x4, offset = 0x4, fixed_abs, tag = 'smem constant byte address 0x4 - core index']
  #allocation1 [shape = 'u32[144,128]{1,0:T(1,128)}', space=vmem, size = 0x12000, scoped, tag = 'internal scratch']
  %s0 = inlined_call_operand.vmem [shape: f32[8,4], index: 0, kind: input, shape index: {}]
  %s1 = inlined_call_operand.hbm [shape: f32[2,4,256], index: 1, kind: input, shape index: {}]
  %s2 = inlined_call_operand.hbm [shape: f32[2,8,256], index: 2, kind: output, shape index: {}]
  %s3 = sld [smem:[#allocation0]]
  $region45: #{tpu_custom_call.1} parent=0
    _
  %s5 = ssub.s32 1, %s3
  %s6 = scalar_select 0, %s5, %s3
  $region1: #{tpu_custom_call.1} parent=0
    #allocation2 [shape = 'u8[8192]{0}', space=vmem, size = 0x2000, scoped, tag = 'input window, operand 1']
    #allocation3 [shape = 's32[2]{0}', space=sflag, size = 0x8, scoped, tag = 'scoped memory for tpu_custom_call.1']
    #allocation4 [shape = 's32[2]{0}', space=sflag, size = 0x8, scoped, tag = 'scoped memory for tpu_custom_call.1']
    #allocation5 [shape = 'u8[16384]{0}', space=vmem, size = 0x4000, scoped, tag = 'output window, operand 0']
    %7 = vsyncpa [#allocation3], 0
    %s8 = scalar_lea.sflag [#allocation3], 1
    %9 = vsyncpa %s8, 0
    %10 = vsyncpa [#allocation4], 0
    %s11 = scalar_lea.sflag [#allocation4], 1
    %12 = vsyncpa %s11, 0
    loop: start=0, step=1, limit=4
    $region2: #{tpu_custom_call.1} parent=1 // loop_pre_header
      _
    $region3: #{tpu_custom_call.1} parent=1 // loop_header
      %s14 = sphi 0, %s18
      %p15 = scmp.ge.s32.totalorder %s14, 4
      %s21 = sphi 0, %s33
      %s22 = sphi 0, %s29
      %s23 = sphi 0, %s21
      %s24 = sphi 0, %s22
      %s25 = sphi 0, %s23
      %s26 = sphi 0, %s24
      %s34 = sphi 0, %s34
      %s36 = sphi 0, %s34
      %s37 = sphi 0, %s36
      %s51 = sphi 0, %s37
      %s59 = sphi 0, %s61
      %s62 = sphi 0, %s59
      %s63 = sphi 0, %s62
      %s79 = sphi 0, %s63
      %s87 = sphi 0, %s89
      %s90 = sphi 0, %s87
      %s91 = sphi 0, %s90
      %s107 = sphi 0, %s91
    $region4: #{tpu_custom_call.1} parent=1 // loop_header_branch
      %17 = sbr.rel (%p15) target = $region8
    $region5: #{tpu_custom_call.1} parent=1 // loop_body
      %s19 = ssub.s32 %s14, 1
      %s20 = ssub.s32 %s14, 2
      %s27 = sadd.s32 1, %s22
      %p28 = scmp.ge.s32.totalorder %s27, 1
      %s29 = scalar_select %p28, 0, %s27
      %s30 = sadd.s32 1, %s21
      %s31 = scalar_select %p28, %s30, %s21
      %p32 = scmp.ge.s32.totalorder %s31, 2
      %s33 = scalar_select %p32, 0, %s31
      %s35 = sadd.s32 %s34, 1
      %p38 = scmp.eq.s32.totalorder %s14, 1
      %p39 = scmp.ne.s32.totalorder %s34, %s36
      %p40 = scmp.eq.s32.totalorder %s14, 0
      %p41 = por %p39, %p40
      %p42 = scmp.ne.s32.totalorder %s34, %s36
      %p43 = scmp.eq.s32.totalorder %s19, 1
      %p44 = por %p42, %p43
      %p45 = scmp.ne.s32.totalorder %s36, %s37
      %p46 = scmp.eq.s32.totalorder %s19, 0
      %p47 = por %p45, %p46
      %p48 = scmp.ne.s32.totalorder %s36, %s37
      %p49 = scmp.eq.s32.totalorder %s20, 1
      %p50 = por %p48, %p49
      %p52 = scmp.ne.s32.totalorder %s37, %s51
      %p53 = scmp.eq.s32.totalorder %s20, 0
      %p54 = por %p52, %p53
      %s55 = ssub.s32 %s21, %s33
      %s56 = ssub.s32 %s22, %s29
      %s57 = sor.u32 %s55, %s56
      %p58 = scmp.eq.s32.totalorder %s57, 0
      %s60 = sadd.s32 %s59, 1
      %s61 = scalar_select %p58, %s59, %s60
      %p64 = pneg %p58
      %p65 = scmp.eq.s32.totalorder %s14, 1
      %p66 = por %p64, %p65
      %p67 = scmp.ne.s32.totalorder %s59, %s62
      %p68 = scmp.eq.s32.totalorder %s14, 0
      %p69 = por %p67, %p68
      %p70 = scmp.ne.s32.totalorder %s59, %s62
      %p71 = scmp.eq.s32.totalorder %s19, 1
      %p72 = por %p70, %p71
      %p73 = scmp.ne.s32.totalorder %s62, %s63
      %p74 = scmp.eq.s32.totalorder %s19, 0
      %p75 = por %p73, %p74
      %p76 = scmp.ne.s32.totalorder %s62, %s63
      %p77 = scmp.eq.s32.totalorder %s20, 1
      %p78 = por %p76, %p77
      %p80 = scmp.ne.s32.totalorder %s63, %s79
      %p81 = scmp.eq.s32.totalorder %s20, 0
      %p82 = por %p80, %p81
      %s83 = ssub.s32 %s21, %s33
      %s84 = ssub.s32 %s22, %s29
      %s85 = sor.u32 %s83, %s84
      %p86 = scmp.eq.s32.totalorder %s85, 0
      %s88 = sadd.s32 %s87, 1
      %s89 = scalar_select %p86, %s87, %s88
      %p92 = pneg %p86
      %p93 = scmp.eq.s32.totalorder %s14, 1
      %p94 = por %p92, %p93
      %p95 = scmp.ne.s32.totalorder %s87, %s90
      %p96 = scmp.eq.s32.totalorder %s14, 0
      %p97 = por %p95, %p96
      %p98 = scmp.ne.s32.totalorder %s87, %s90
      %p99 = scmp.eq.s32.totalorder %s19, 1
      %p100 = por %p98, %p99
      %p101 = scmp.ne.s32.totalorder %s90, %s91
      %p102 = scmp.eq.s32.totalorder %s19, 0
      %p103 = por %p101, %p102
      %p104 = scmp.ne.s32.totalorder %s90, %s91
      %p105 = scmp.eq.s32.totalorder %s20, 1
      %p106 = por %p104, %p105
      %p108 = scmp.ne.s32.totalorder %s91, %s107
      %p109 = scmp.eq.s32.totalorder %s20, 0
      %p110 = por %p108, %p109
      %p111 = scmp.le.s32.totalorder 1, %s14
      %p112 = scmp.lt.s32.totalorder %s14, 3
      %p113 = pnand %p111, %p112
      %p114 = pneg %p113
      // Predicated region
      $region9: #{tpu_custom_call.1} parent=5 // pred_check
        _
      $region10: #{tpu_custom_call.1} parent=5 // pred_check_branch
        %116 = sbr.rel (%p113) target = $region12
      $region11: #{tpu_custom_call.1} parent=5 // pred_region
        %s117 = ssub.s32 %s14, 1
        // Predicated region
        $region13: #{tpu_custom_call.1} parent=11 // pred_check
          %p118 = pneg %p47
        $region14: #{tpu_custom_call.1} parent=11 // pred_check_branch
          %120 = sbr.rel (%p118) target = $region16
        $region15: #{tpu_custom_call.1} parent=11 // pred_region
          _
        $region16: #{tpu_custom_call.1} parent=11 // pred_fallthru
          _
      $region12: #{tpu_custom_call.1} parent=5 // pred_fallthru
        _
      %p121 = scmp.lt.s32.totalorder %s14, 2
      // Predicated region
      $region17: #{tpu_custom_call.1} parent=5 // pred_check
        %p122 = pneg %p121
      $region18: #{tpu_custom_call.1} parent=5 // pred_check_branch
        %124 = sbr.rel (%p122) target = $region20
      $region19: #{tpu_custom_call.1} parent=5 // pred_region
        // Predicated region
        $region21: #{tpu_custom_call.1} parent=19 // pred_check
          %p125 = pneg %p69
        $region22: #{tpu_custom_call.1} parent=19 // pred_check_branch
          %127 = sbr.rel (%p125) target = $region24
        $region23: #{tpu_custom_call.1} parent=19 // pred_region
          %s128 = sand.u32 %s59, 1
          %s129 = scalar_lea.sflag [#allocation3], %s128
          %s130 = sand.u32 %s59, 1
          %s131 = smul.addr %s130, 8
          %s132 = scalar_lea.vmem [#allocation2], %s131
          %s133 = smul.u32 2, %s22
          %s135 = ssub.s32 128, 128
          %136 = vsyncadd %s129, %s135
          %s137 = smul.addr %s21, 2
          %s138 = sadd.s32 %s133, %s137
          %s139 = smul.addr %s138, 64
          %s140 = scalar_lea.hbm %s1, %s139
          %s142 = sshll.u32 %s132, 4
          %s143 = int_to_ptr.vmem [resolvable:$true] %s142
          %145 = dma.hbm_to_vmem [thread:$0]  %s140, 128, %s143, %s129
        $region24: #{tpu_custom_call.1} parent=19 // pred_fallthru
          _
      $region20: #{tpu_custom_call.1} parent=5 // pred_fallthru
        _
      %p146 = scmp.le.s32.totalorder 1, %s14
      %p147 = scmp.lt.s32.totalorder %s14, 3
      %p148 = pnand %p146, %p147
      %p149 = pneg %p148
      // Predicated region
      $region25: #{tpu_custom_call.1} parent=5 // pred_check
        _
      $region26: #{tpu_custom_call.1} parent=5 // pred_check_branch
        %151 = sbr.rel (%p148) target = $region28
      $region27: #{tpu_custom_call.1} parent=5 // pred_region
        %s152 = ssub.s32 %s14, 1
        %s153 = sand.u32 %s62, 1
        %s154 = scalar_lea.sflag [#allocation3], %s153
        %s155 = sand.u32 %s62, 1
        %s156 = smul.addr %s155, 8
        %s157 = scalar_lea.vmem [#allocation2], %s156
        // Predicated region
        $region29: #{tpu_custom_call.1} parent=27 // pred_check
          %p158 = pneg %p75
        $region30: #{tpu_custom_call.1} parent=27 // pred_check_branch
          %160 = sbr.rel (%p158) target = $region32
        $region31: #{tpu_custom_call.1} parent=27 // pred_region
          %161 = dma.done %s154, 128
        $region32: #{tpu_custom_call.1} parent=27 // pred_fallthru
          _
        %p162 = pneg %p47
        %p163 = pneg %p44
        %s164 = sand.u32 %s62, 1
        %s165 = scalar_lea.sflag [#allocation3], %s164
        %s166 = sand.u32 %s62, 1
        %s167 = smul.addr %s166, 8
        %s168 = scalar_lea.vmem [#allocation2], %s167
        %p169 = pneg %p75
        %p170 = pneg %p72
        %p171 = pneg %p103
        %p172 = pneg %p100
        %s173 = sand.u32 %s90, 1
        %s174 = scalar_lea.sflag [#allocation4], %s173
        %s175 = sand.u32 %s90, 1
        %s176 = smul.addr %s175, 16
        %s177 = scalar_lea.vmem [#allocation5], %s176
        %s178 = smul.u32 2, %s24
        %s179 = smul.u32 2, %s24
        %v180 = vld [vmem:[%s0] sm:$0xff]
        %v181 = vld [vmem:[%s157] ss:$4 sm:$0x3]
        %183 = vset.pattern.permute.xlu0 0
        %184 = vperm.xlu0 %183, %v180
        %v185 = vpop.permute.xlu0 %184
        %v188 = vlaneseq
        %v189 = vshrl.u32 %v188, 7
        %v190 = vsub.s32 0, %v189
        %v191 = vrot.slane %v181, %v190
        %v192 = vlaneseq
        %v193 = vshrl.u32 %v192, 7
        %v194 = vsub.s32 1, %v193
        %v195 = vrot.slane %v181, %v194
        %v198 = vmul.f32 %v185, %v191
        %v199 = vmul.f32 %v185, %v195
        %s200 = scalar_lea.vmem %s157, 1 [#allocation2]
        %v201 = vld [vmem:[%s200] ss:$4 sm:$0x3]
        %202 = vset.pattern.permute.xlu0 1
        %203 = vperm.xlu0 %202, %v180
        %v204 = vpop.permute.xlu0 %203
        %v207 = vlaneseq
        %v208 = vshrl.u32 %v207, 7
        %v209 = vsub.s32 0, %v208
        %v210 = vrot.slane %v201, %v209
        %v211 = vlaneseq
        %v212 = vshrl.u32 %v211, 7
        %v213 = vsub.s32 1, %v212
        %v214 = vrot.slane %v201, %v213
        %v217 = vmul.f32 %v204, %v210
        %v218 = vmul.f32 %v204, %v214
        %v219 = vadd.f32 %v198, %v217
        %v220 = vadd.f32 %v199, %v218
        %s221 = scalar_lea.vmem %s157, 2 [#allocation2]
        %v222 = vld [vmem:[%s221] ss:$4 sm:$0x3]
        %223 = vset.pattern.permute.xlu0 2
        %224 = vperm.xlu0 %223, %v180
        %v225 = vpop.permute.xlu0 %224
        %v228 = vlaneseq
        %v229 = vshrl.u32 %v228, 7
        %v230 = vsub.s32 0, %v229
        %v231 = vrot.slane %v222, %v230
        %v232 = vlaneseq
        %v233 = vshrl.u32 %v232, 7
        %v234 = vsub.s32 1, %v233
        %v235 = vrot.slane %v222, %v234
        %v238 = vmul.f32 %v225, %v231
        %v239 = vmul.f32 %v225, %v235
        %v240 = vadd.f32 %v219, %v238
        %v241 = vadd.f32 %v220, %v239
        %s242 = scalar_lea.vmem %s157, 3 [#allocation2]
        %v243 = vld [vmem:[%s242] ss:$4 sm:$0x3]
        %244 = vset.pattern.permute.xlu0 3
        %245 = vperm.xlu0 %244, %v180
        %v246 = vpop.permute.xlu0 %245
        %v249 = vlaneseq
        %v250 = vshrl.u32 %v249, 7
        %v251 = vsub.s32 0, %v250
        %v252 = vrot.slane %v243, %v251
        %v253 = vlaneseq
        %v254 = vshrl.u32 %v253, 7
        %v255 = vsub.s32 1, %v254
        %v256 = vrot.slane %v243, %v255
        %v259 = vmul.f32 %v246, %v252
        %v260 = vmul.f32 %v246, %v256
        %v261 = vadd.f32 %v240, %v259
        %v262 = vadd.f32 %v241, %v260
        %263 = vst [vmem:[%s177] sm:$0xff] %v261
        %264 = vst [vmem:[%s177 + $0x8] sm:$0xff] %v262
        %s265 = sand.u32 %s90, 1
        %s266 = scalar_lea.sflag [#allocation4], %s265
        %s267 = sand.u32 %s90, 1
        %s268 = smul.addr %s267, 16
        %s269 = scalar_lea.vmem [#allocation5], %s268
        // Predicated region
        $region33: #{tpu_custom_call.1} parent=27 // pred_check
          %p270 = pneg %p100
        $region34: #{tpu_custom_call.1} parent=27 // pred_check_branch
          %272 = sbr.rel (%p270) target = $region36
        $region35: #{tpu_custom_call.1} parent=27 // pred_region
          %s273 = smul.u32 2, %s24
          %s275 = ssub.s32 256, 256
          %276 = vsyncadd %s266, %s275
          %s277 = smul.addr %s23, 2
          %s278 = sadd.s32 %s273, %s277
          %s279 = smul.addr %s278, 128
          %s280 = scalar_lea.hbm %s2, %s279
          %s282 = sshll.u32 %s269, 4
          %s283 = int_to_ptr.vmem [resolvable:$true] %s282
          %285 = dma.vmem_to_hbm [thread:$0]  %s283, 256, %s280, %s266
        $region36: #{tpu_custom_call.1} parent=27 // pred_fallthru
          _
      $region28: #{tpu_custom_call.1} parent=5 // pred_fallthru
        _
      %p286 = scmp.le.s32.totalorder 2, %s14
      // Predicated region
      $region37: #{tpu_custom_call.1} parent=5 // pred_check
        %p287 = pneg %p286
      $region38: #{tpu_custom_call.1} parent=5 // pred_check_branch
        %289 = sbr.rel (%p287) target = $region40
      $region39: #{tpu_custom_call.1} parent=5 // pred_region
        %s290 = ssub.s32 %s14, 2
        // Predicated region
        $region41: #{tpu_custom_call.1} parent=39 // pred_check
          %p291 = pneg %p106
        $region42: #{tpu_custom_call.1} parent=39 // pred_check_branch
          %293 = sbr.rel (%p291) target = $region44
        $region43: #{tpu_custom_call.1} parent=39 // pred_region
          %s294 = sand.u32 %s91, 1
          %s295 = scalar_lea.sflag [#allocation4], %s294
          %s296 = sand.u32 %s91, 1
          %s297 = smul.addr %s296, 16
          %s298 = scalar_lea.vmem [#allocation5], %s297
          %299 = dma.done %s295, 256
        $region44: #{tpu_custom_call.1} parent=39 // pred_fallthru
          _
      $region40: #{tpu_custom_call.1} parent=5 // pred_fallthru
        _
    $region6: #{tpu_custom_call.1} parent=1 // loop_footer
      %s18 = sadd.s32 1, %s14
    $region7: #{tpu_custom_call.1} parent=1 // loop_footer_branch
      %13 = sbr.rel target = $region3
    $region8: #{tpu_custom_call.1} parent=1 // loop_exit
      _
    %300 = vsyncpa [#allocation3], 1
    %s301 = scalar_lea.sflag [#allocation3], 1
    %302 = vsyncpa %s301, 1
    %303 = vsyncpa [#allocation4], 1
    %s304 = scalar_lea.sflag [#allocation4], 1
    %305 = vsyncpa %s304, 1

</llo_original>
